<compile_context>
chip_gen: v7x
topology: tpu7x:2x2x1
jax: 0.10.0
libtpu: 0.0.40
codegen_flags: <defaults>
</compile_context>

<pallas_src>
import jax
import jax.numpy as jnp
from jax.experimental import pallas as pl
from jax.experimental.pallas import tpu as pltpu

HIDDEN = 64   # self.hidden_size
OUT = 2       # self.output_size
INPUT = 1     # self.input_size


def lstm_fc_kernel(x_ref, w_ih_ref, w_hh_ref, b_ref, w_fc_ref, b_fc_ref,
                   out_ref, xw_ref):
    # x_ref   : (T, B, 1)   f32
    # w_ih_ref: (1, 4H)     f32   (= W_ih^T, input_size == 1)
    # w_hh_ref: (H, 4H)     f32   (= W_hh^T)
    # b_ref   : (1, 4H)     f32   (= b_ih + b_hh)
    # w_fc_ref: (H, OUT)    f32   (= W_fc^T)
    # b_fc_ref: (1, OUT)    f32
    # out_ref : (B, OUT)    f32
    # xw_ref  : (T, B, 4H)  f32   VMEM scratch (hoisted input contribution)
    T, B, _ = x_ref.shape
    H = w_hh_ref.shape[0]
    H4 = 4 * H

    # ---- hoisted, loop-invariant work -------------------------------------
    # sigmoid(x) = 0.5*tanh(0.5*x) + 0.5  => per-column scale s (0.5 for
    # i/f/o, 1.0 for g) and shift (0.5 / 0.0) let ONE (B, 4H) tanh produce
    # all four gate activations.  The pre-scale s is folded into W_hh and xw.
    lane1 = jax.lax.broadcasted_iota(jnp.int32, (1, H4), 1)
    g_col1 = (lane1 >= 2 * H) & (lane1 < 3 * H)
    scale1 = jnp.where(g_col1, jnp.float32(1.0), jnp.float32(0.5))   # (1, 4H)

    laneB = jax.lax.broadcasted_iota(jnp.int32, (B, H4), 1)
    g_colB = (laneB >= 2 * H) & (laneB < 3 * H)
    scale_b = jnp.where(g_colB, jnp.float32(1.0), jnp.float32(0.5))  # (B, 4H)
    shift_b = jnp.where(g_colB, jnp.float32(0.0), jnp.float32(0.5))  # (B, 4H)

    w_hh = w_hh_ref[...] * scale1                                    # (H, 4H)

    # Input contribution + fused bias for all timesteps, computed once
    # outside the serial recurrence (input_size == 1 => lane broadcast).
    xw_ref[...] = (x_ref[...] * w_ih_ref[...] + b_ref[...]) * scale1  # (T,B,4H)

    # ---- recurrence --------------------------------------------------------
    def step(t, carry):
        h, c = carry
        gates = jnp.dot(h, w_hh, preferred_element_type=jnp.float32) + xw_ref[t]
        act = jnp.tanh(gates) * scale_b + shift_b   # one full-width EUP pass
        # PyTorch gate order: i, f, g, o
        i = act[:, 0:H]
        f = act[:, H:2 * H]
        g = act[:, 2 * H:3 * H]
        o = act[:, 3 * H:4 * H]
        c_new = f * c + i * g
        h_new = o * jnp.tanh(c_new)
        return (h_new, c_new)

    h0 = jnp.zeros((B, H), jnp.float32)
    c0 = jnp.zeros((B, H), jnp.float32)
    h_T, _ = jax.lax.fori_loop(0, T, step, (h0, c0), unroll=True)

    # fc on final hidden state (h_out.view(-1, H) == h_T for num_layers == 1);
    # bias folded into the epilogue add.
    # TODO(synk): nn.Dropout(p=0.2) is stochastic in train mode; modeled here
    # as eval-mode identity (nn.ReLU is defined but unused in forward()).
    out_ref[...] = (jnp.dot(h_T, w_fc_ref[...], preferred_element_type=jnp.float32)
                    + b_fc_ref[...])


def lstm_forward(x, params):
    """x: (B, T, 1) float32 (batch_first, matches the PyTorch module input)."""
    w_ih, w_hh, b_ih, b_hh, w_fc, b_fc = params
    B, T, _ = x.shape

    x_tm = jnp.transpose(x, (1, 0, 2)).astype(jnp.float32)   # (T, B, 1)
    w_ih_t = w_ih.T                                          # (1, 4H)
    w_hh_t = w_hh.T                                          # (H, 4H)
    b = (b_ih + b_hh).reshape(1, -1)                         # (1, 4H)
    w_fc_t = w_fc.T                                          # (H, OUT)
    b_fc_r = b_fc.reshape(1, -1)                             # (1, OUT)

    vmem = pl.BlockSpec(memory_space=pltpu.MemorySpace.VMEM)
    return pl.pallas_call(
        lstm_fc_kernel,
        out_shape=jax.ShapeDtypeStruct((B, OUT), jnp.float32),
        in_specs=[vmem] * 6,
        out_specs=vmem,
        scratch_shapes=[pltpu.VMEM((T, B, 4 * HIDDEN), jnp.float32)],
    )(x_tm, w_ih_t, w_hh_t, b, w_fc_t, b_fc_r)


def lstm_forward_ref(x, params):
    """Pure-JAX reference matching torch.nn.LSTM + Linear (dropout in eval)."""
    w_ih, w_hh, b_ih, b_hh, w_fc, b_fc = params
    B, T, _ = x.shape
    H = HIDDEN
    h = jnp.zeros((B, H), jnp.float32)
    c = jnp.zeros((B, H), jnp.float32)
    for t in range(T):
        gates = x[:, t, :] @ w_ih.T + h @ w_hh.T + b_ih + b_hh
        i = jax.nn.sigmoid(gates[:, 0:H])
        f = jax.nn.sigmoid(gates[:, H:2 * H])
        g = jnp.tanh(gates[:, 2 * H:3 * H])
        o = jax.nn.sigmoid(gates[:, 3 * H:4 * H])
        c = f * c + i * g
        h = o * jnp.tanh(c)
    return h @ w_fc.T + b_fc


def init_params(key):
    H, I, O = HIDDEN, INPUT, OUT
    k = jax.random.split(key, 6)
    s = 1.0 / jnp.sqrt(H)  # PyTorch LSTM init range
    w_ih = jax.random.uniform(k[0], (4 * H, I), jnp.float32, -s, s)
    w_hh = jax.random.uniform(k[1], (4 * H, H), jnp.float32, -s, s)
    b_ih = jax.random.uniform(k[2], (4 * H,), jnp.float32, -s, s)
    b_hh = jax.random.uniform(k[3], (4 * H,), jnp.float32, -s, s)
    w_fc = jax.random.uniform(k[4], (O, H), jnp.float32, -s, s)
    b_fc = jax.random.uniform(k[5], (O,), jnp.float32, -s, s)
    return (w_ih, w_hh, b_ih, b_hh, w_fc, b_fc)


if __name__ == "__main__":
    key = jax.random.PRNGKey(0)
    kx, kp = jax.random.split(key)

    B, T = 2, 8
    # PyTorch: x_tensor = reshape(x, (B, T, 1))
    x = jax.random.normal(kx, (B, T, INPUT), dtype=jnp.float32)
    params = init_params(kp)

    out = jax.block_until_ready(lstm_forward(x, params))
    ref = lstm_forward_ref(x, params)

    assert out.shape == (B, OUT), out.shape
    assert jnp.allclose(out, ref, atol=1e-4, rtol=1e-4), (out, ref)
    print("KERNEL_OK")
</pallas_src>

<mosaic_0001>
module attributes {stable_mosaic.version = 11 : i64} {
  func.func @lstm_fc_kernel(%arg0: memref<8x2x1xf32, #tpu.memory_space<vmem>>, %arg1: memref<1x256xf32, #tpu.memory_space<vmem>>, %arg2: memref<64x256xf32, #tpu.memory_space<vmem>>, %arg3: memref<1x256xf32, #tpu.memory_space<vmem>>, %arg4: memref<64x2xf32, #tpu.memory_space<vmem>>, %arg5: memref<1x2xf32, #tpu.memory_space<vmem>>, %arg6: memref<2x2xf32, #tpu.memory_space<vmem>>, %arg7: memref<8x2x256xf32, #tpu.memory_space<vmem>>) attributes {dimension_semantics = [], scalar_prefetch = 0 : i64, scratch_operands = 1 : i64, tpu.core_type = #tpu.core_type<tc>} {
    %0 = tpu.iota {dimensions = array<i32: 1>} : vector<1x256xi32>
    %c128_i32 = arith.constant 128 : i32
    %1 = vector.broadcast %c128_i32 : i32 to vector<1x256xi32>
    %2 = arith.cmpi sge, %0, %1 : vector<1x256xi32>
    %c192_i32 = arith.constant 192 : i32
    %3 = vector.broadcast %c192_i32 : i32 to vector<1x256xi32>
    %4 = arith.cmpi slt, %0, %3 : vector<1x256xi32>
    %5 = arith.andi %2, %4 : vector<1x256xi1>
    %cst = arith.constant 1.000000e+00 : f32
    %cst_0 = arith.constant 5.000000e-01 : f32
    %6 = vector.broadcast %cst : f32 to vector<1x256xf32>
    %7 = vector.broadcast %cst_0 : f32 to vector<1x256xf32>
    %8 = arith.select %5, %6, %7 : vector<1x256xi1>, vector<1x256xf32>
    %9 = tpu.iota {dimensions = array<i32: 1>} : vector<2x256xi32>
    %c128_i32_1 = arith.constant 128 : i32
    %10 = vector.broadcast %c128_i32_1 : i32 to vector<2x256xi32>
    %11 = arith.cmpi sge, %9, %10 : vector<2x256xi32>
    %c192_i32_2 = arith.constant 192 : i32
    %12 = vector.broadcast %c192_i32_2 : i32 to vector<2x256xi32>
    %13 = arith.cmpi slt, %9, %12 : vector<2x256xi32>
    %14 = arith.andi %11, %13 : vector<2x256xi1>
    %cst_3 = arith.constant 1.000000e+00 : f32
    %cst_4 = arith.constant 5.000000e-01 : f32
    %15 = vector.broadcast %cst_3 : f32 to vector<2x256xf32>
    %16 = vector.broadcast %cst_4 : f32 to vector<2x256xf32>
    %17 = arith.select %14, %15, %16 : vector<2x256xi1>, vector<2x256xf32>
    %cst_5 = arith.constant 0.000000e+00 : f32
    %cst_6 = arith.constant 5.000000e-01 : f32
    %18 = vector.broadcast %cst_5 : f32 to vector<2x256xf32>
    %19 = vector.broadcast %cst_6 : f32 to vector<2x256xf32>
    %20 = arith.select %14, %18, %19 : vector<2x256xi1>, vector<2x256xf32>
    %c0 = arith.constant 0 : index
    %c0_7 = arith.constant 0 : index
    %21 = vector.load %arg2[%c0, %c0_7] : memref<64x256xf32, #tpu.memory_space<vmem>>, vector<64x256xf32>
    %22 = vector.broadcast %8 : vector<1x256xf32> to vector<64x256xf32>
    %23 = arith.mulf %21, %22 : vector<64x256xf32>
    %c0_8 = arith.constant 0 : index
    %c0_9 = arith.constant 0 : index
    %c0_10 = arith.constant 0 : index
    %24 = vector.load %arg0[%c0_8, %c0_9, %c0_10] : memref<8x2x1xf32, #tpu.memory_space<vmem>>, vector<8x2x1xf32>
    %c0_11 = arith.constant 0 : index
    %c0_12 = arith.constant 0 : index
    %25 = vector.load %arg1[%c0_11, %c0_12] : memref<1x256xf32, #tpu.memory_space<vmem>>, vector<1x256xf32>
    %26 = vector.shape_cast %25 : vector<1x256xf32> to vector<1x1x256xf32>
    %27 = vector.broadcast %24 : vector<8x2x1xf32> to vector<8x2x256xf32>
    %28 = vector.broadcast %26 : vector<1x1x256xf32> to vector<8x2x256xf32>
    %29 = arith.mulf %27, %28 : vector<8x2x256xf32>
    %c0_13 = arith.constant 0 : index
    %c0_14 = arith.constant 0 : index
    %30 = vector.load %arg3[%c0_13, %c0_14] : memref<1x256xf32, #tpu.memory_space<vmem>>, vector<1x256xf32>
    %31 = vector.shape_cast %30 : vector<1x256xf32> to vector<1x1x256xf32>
    %32 = vector.broadcast %31 : vector<1x1x256xf32> to vector<8x2x256xf32>
    %33 = arith.addf %29, %32 : vector<8x2x256xf32>
    %34 = vector.shape_cast %8 : vector<1x256xf32> to vector<1x1x256xf32>
    %35 = vector.broadcast %34 : vector<1x1x256xf32> to vector<8x2x256xf32>
    %36 = arith.mulf %33, %35 : vector<8x2x256xf32>
    %c0_15 = arith.constant 0 : index
    %c0_16 = arith.constant 0 : index
    %c0_17 = arith.constant 0 : index
    %37 = vector.load %arg7[%c0_15, %c0_16, %c0_17] : memref<8x2x256xf32, #tpu.memory_space<vmem>>, vector<8x2x256xf32>
    tpu.vector_store %arg7[%c0_15, %c0_16, %c0_17], %36 {strides = array<i32>} : memref<8x2x256xf32, #tpu.memory_space<vmem>>, vector<8x2x256xf32>,
    %cst_18 = arith.constant 0.000000e+00 : f32
    %38 = vector.broadcast %cst_18 : f32 to vector<2x64xf32>
    %cst_19 = arith.constant 0.000000e+00 : f32
    %39 = vector.broadcast %cst_19 : f32 to vector<2x64xf32>
    %c0_i32 = arith.constant 0 : i32
    %cst_20 = arith.constant dense<0.000000e+00> : vector<2x256xf32>
    %40 = tpu.matmul %38, %23, %cst_20 {dimension_numbers = #tpu.dot_dimension_numbers<[1], [0], [0], [1], [0, 0, 1, 1], [], []>} : vector<2x64xf32>, vector<64x256xf32>, vector<2x256xf32> -> vector<2x256xf32>
    %41 = arith.index_cast %c0_i32 : i32 to index
    %c0_21 = arith.constant 0 : index
    %c0_22 = arith.constant 0 : index
    %42 = vector.load %arg7[%41, %c0_21, %c0_22] : memref<8x2x256xf32, #tpu.memory_space<vmem>>, vector<1x2x256xf32>
    %43 = vector.shape_cast %42 : vector<1x2x256xf32> to vector<2x256xf32>
    %44 = arith.addf %40, %43 : vector<2x256xf32>
    %45 = math.tanh %44 : vector<2x256xf32>
    %46 = arith.mulf %45, %17 : vector<2x256xf32>
    %47 = arith.addf %46, %20 : vector<2x256xf32>
    %48 = vector.extract_strided_slice %47 {offsets = [0, 0], sizes = [2, 64], strides = [1, 1]} : vector<2x256xf32> to vector<2x64xf32>
    %49 = vector.extract_strided_slice %47 {offsets = [0, 64], sizes = [2, 64], strides = [1, 1]} : vector<2x256xf32> to vector<2x64xf32>
    %50 = vector.extract_strided_slice %47 {offsets = [0, 128], sizes = [2, 64], strides = [1, 1]} : vector<2x256xf32> to vector<2x64xf32>
    %51 = vector.extract_strided_slice %47 {offsets = [0, 192], sizes = [2, 64], strides = [1, 1]} : vector<2x256xf32> to vector<2x64xf32>
    %52 = arith.mulf %49, %39 : vector<2x64xf32>
    %53 = arith.mulf %48, %50 : vector<2x64xf32>
    %54 = arith.addf %52, %53 : vector<2x64xf32>
    %55 = math.tanh %54 : vector<2x64xf32>
    %56 = arith.mulf %51, %55 : vector<2x64xf32>
    %c1_i32 = arith.constant 1 : i32
    %cst_23 = arith.constant dense<0.000000e+00> : vector<2x256xf32>
    %57 = tpu.matmul %56, %23, %cst_23 {dimension_numbers = #tpu.dot_dimension_numbers<[1], [0], [0], [1], [0, 0, 1, 1], [], []>} : vector<2x64xf32>, vector<64x256xf32>, vector<2x256xf32> -> vector<2x256xf32>
    %58 = arith.index_cast %c1_i32 : i32 to index
    %c0_24 = arith.constant 0 : index
    %c0_25 = arith.constant 0 : index
    %59 = vector.load %arg7[%58, %c0_24, %c0_25] : memref<8x2x256xf32, #tpu.memory_space<vmem>>, vector<1x2x256xf32>
    %60 = vector.shape_cast %59 : vector<1x2x256xf32> to vector<2x256xf32>
    %61 = arith.addf %57, %60 : vector<2x256xf32>
    %62 = math.tanh %61 : vector<2x256xf32>
    %63 = arith.mulf %62, %17 : vector<2x256xf32>
    %64 = arith.addf %63, %20 : vector<2x256xf32>
    %65 = vector.extract_strided_slice %64 {offsets = [0, 0], sizes = [2, 64], strides = [1, 1]} : vector<2x256xf32> to vector<2x64xf32>
    %66 = vector.extract_strided_slice %64 {offsets = [0, 64], sizes = [2, 64], strides = [1, 1]} : vector<2x256xf32> to vector<2x64xf32>
    %67 = vector.extract_strided_slice %64 {offsets = [0, 128], sizes = [2, 64], strides = [1, 1]} : vector<2x256xf32> to vector<2x64xf32>
    %68 = vector.extract_strided_slice %64 {offsets = [0, 192], sizes = [2, 64], strides = [1, 1]} : vector<2x256xf32> to vector<2x64xf32>
    %69 = arith.mulf %66, %54 : vector<2x64xf32>
    %70 = arith.mulf %65, %67 : vector<2x64xf32>
    %71 = arith.addf %69, %70 : vector<2x64xf32>
    %72 = math.tanh %71 : vector<2x64xf32>
    %73 = arith.mulf %68, %72 : vector<2x64xf32>
    %c2_i32 = arith.constant 2 : i32
    %cst_26 = arith.constant dense<0.000000e+00> : vector<2x256xf32>
    %74 = tpu.matmul %73, %23, %cst_26 {dimension_numbers = #tpu.dot_dimension_numbers<[1], [0], [0], [1], [0, 0, 1, 1], [], []>} : vector<2x64xf32>, vector<64x256xf32>, vector<2x256xf32> -> vector<2x256xf32>
    %75 = arith.index_cast %c2_i32 : i32 to index
    %c0_27 = arith.constant 0 : index
    %c0_28 = arith.constant 0 : index
    %76 = vector.load %arg7[%75, %c0_27, %c0_28] : memref<8x2x256xf32, #tpu.memory_space<vmem>>, vector<1x2x256xf32>
    %77 = vector.shape_cast %76 : vector<1x2x256xf32> to vector<2x256xf32>
    %78 = arith.addf %74, %77 : vector<2x256xf32>
    %79 = math.tanh %78 : vector<2x256xf32>
    %80 = arith.mulf %79, %17 : vector<2x256xf32>
    %81 = arith.addf %80, %20 : vector<2x256xf32>
    %82 = vector.extract_strided_slice %81 {offsets = [0, 0], sizes = [2, 64], strides = [1, 1]} : vector<2x256xf32> to vector<2x64xf32>
    %83 = vector.extract_strided_slice %81 {offsets = [0, 64], sizes = [2, 64], strides = [1, 1]} : vector<2x256xf32> to vector<2x64xf32>
    %84 = vector.extract_strided_slice %81 {offsets = [0, 128], sizes = [2, 64], strides = [1, 1]} : vector<2x256xf32> to vector<2x64xf32>
    %85 = vector.extract_strided_slice %81 {offsets = [0, 192], sizes = [2, 64], strides = [1, 1]} : vector<2x256xf32> to vector<2x64xf32>
    %86 = arith.mulf %83, %71 : vector<2x64xf32>
    %87 = arith.mulf %82, %84 : vector<2x64xf32>
    %88 = arith.addf %86, %87 : vector<2x64xf32>
    %89 = math.tanh %88 : vector<2x64xf32>
    %90 = arith.mulf %85, %89 : vector<2x64xf32>
    %c3_i32 = arith.constant 3 : i32
    %cst_29 = arith.constant dense<0.000000e+00> : vector<2x256xf32>
    %91 = tpu.matmul %90, %23, %cst_29 {dimension_numbers = #tpu.dot_dimension_numbers<[1], [0], [0], [1], [0, 0, 1, 1], [], []>} : vector<2x64xf32>, vector<64x256xf32>, vector<2x256xf32> -> vector<2x256xf32>
    %92 = arith.index_cast %c3_i32 : i32 to index
    %c0_30 = arith.constant 0 : index
    %c0_31 = arith.constant 0 : index
    %93 = vector.load %arg7[%92, %c0_30, %c0_31] : memref<8x2x256xf32, #tpu.memory_space<vmem>>, vector<1x2x256xf32>
    %94 = vector.shape_cast %93 : vector<1x2x256xf32> to vector<2x256xf32>
    %95 = arith.addf %91, %94 : vector<2x256xf32>
    %96 = math.tanh %95 : vector<2x256xf32>
    %97 = arith.mulf %96, %17 : vector<2x256xf32>
    %98 = arith.addf %97, %20 : vector<2x256xf32>
    %99 = vector.extract_strided_slice %98 {offsets = [0, 0], sizes = [2, 64], strides = [1, 1]} : vector<2x256xf32> to vector<2x64xf32>
    %100 = vector.extract_strided_slice %98 {offsets = [0, 64], sizes = [2, 64], strides = [1, 1]} : vector<2x256xf32> to vector<2x64xf32>
    %101 = vector.extract_strided_slice %98 {offsets = [0, 128], sizes = [2, 64], strides = [1, 1]} : vector<2x256xf32> to vector<2x64xf32>
    %102 = vector.extract_strided_slice %98 {offsets = [0, 192], sizes = [2, 64], strides = [1, 1]} : vector<2x256xf32> to vector<2x64xf32>
    %103 = arith.mulf %100, %88 : vector<2x64xf32>
    %104 = arith.mulf %99, %101 : vector<2x64xf32>
    %105 = arith.addf %103, %104 : vector<2x64xf32>
    %106 = math.tanh %105 : vector<2x64xf32>
    %107 = arith.mulf %102, %106 : vector<2x64xf32>
    %c4_i32 = arith.constant 4 : i32
    %cst_32 = arith.constant dense<0.000000e+00> : vector<2x256xf32>
    %108 = tpu.matmul %107, %23, %cst_32 {dimension_numbers = #tpu.dot_dimension_numbers<[1], [0], [0], [1], [0, 0, 1, 1], [], []>} : vector<2x64xf32>, vector<64x256xf32>, vector<2x256xf32> -> vector<2x256xf32>
    %109 = arith.index_cast %c4_i32 : i32 to index
    %c0_33 = arith.constant 0 : index
    %c0_34 = arith.constant 0 : index
    %110 = vector.load %arg7[%109, %c0_33, %c0_34] : memref<8x2x256xf32, #tpu.memory_space<vmem>>, vector<1x2x256xf32>
    %111 = vector.shape_cast %110 : vector<1x2x256xf32> to vector<2x256xf32>
    %112 = arith.addf %108, %111 : vector<2x256xf32>
    %113 = math.tanh %112 : vector<2x256xf32>
    %114 = arith.mulf %113, %17 : vector<2x256xf32>
    %115 = arith.addf %114, %20 : vector<2x256xf32>
    %116 = vector.extract_strided_slice %115 {offsets = [0, 0], sizes = [2, 64], strides = [1, 1]} : vector<2x256xf32> to vector<2x64xf32>
    %117 = vector.extract_strided_slice %115 {offsets = [0, 64], sizes = [2, 64], strides = [1, 1]} : vector<2x256xf32> to vector<2x64xf32>
    %118 = vector.extract_strided_slice %115 {offsets = [0, 128], sizes = [2, 64], strides = [1, 1]} : vector<2x256xf32> to vector<2x64xf32>
    %119 = vector.extract_strided_slice %115 {offsets = [0, 192], sizes = [2, 64], strides = [1, 1]} : vector<2x256xf32> to vector<2x64xf32>
    %120 = arith.mulf %117, %105 : vector<2x64xf32>
    %121 = arith.mulf %116, %118 : vector<2x64xf32>
    %122 = arith.addf %120, %121 : vector<2x64xf32>
    %123 = math.tanh %122 : vector<2x64xf32>
    %124 = arith.mulf %119, %123 : vector<2x64xf32>
    %c5_i32 = arith.constant 5 : i32
    %cst_35 = arith.constant dense<0.000000e+00> : vector<2x256xf32>
    %125 = tpu.matmul %124, %23, %cst_35 {dimension_numbers = #tpu.dot_dimension_numbers<[1], [0], [0], [1], [0, 0, 1, 1], [], []>} : vector<2x64xf32>, vector<64x256xf32>, vector<2x256xf32> -> vector<2x256xf32>
    %126 = arith.index_cast %c5_i32 : i32 to index
    %c0_36 = arith.constant 0 : index
    %c0_37 = arith.constant 0 : index
    %127 = vector.load %arg7[%126, %c0_36, %c0_37] : memref<8x2x256xf32, #tpu.memory_space<vmem>>, vector<1x2x256xf32>
    %128 = vector.shape_cast %127 : vector<1x2x256xf32> to vector<2x256xf32>
    %129 = arith.addf %125, %128 : vector<2x256xf32>
    %130 = math.tanh %129 : vector<2x256xf32>
    %131 = arith.mulf %130, %17 : vector<2x256xf32>
    %132 = arith.addf %131, %20 : vector<2x256xf32>
    %133 = vector.extract_strided_slice %132 {offsets = [0, 0], sizes = [2, 64], strides = [1, 1]} : vector<2x256xf32> to vector<2x64xf32>
    %134 = vector.extract_strided_slice %132 {offsets = [0, 64], sizes = [2, 64], strides = [1, 1]} : vector<2x256xf32> to vector<2x64xf32>
    %135 = vector.extract_strided_slice %132 {offsets = [0, 128], sizes = [2, 64], strides = [1, 1]} : vector<2x256xf32> to vector<2x64xf32>
    %136 = vector.extract_strided_slice %132 {offsets = [0, 192], sizes = [2, 64], strides = [1, 1]} : vector<2x256xf32> to vector<2x64xf32>
    %137 = arith.mulf %134, %122 : vector<2x64xf32>
    %138 = arith.mulf %133, %135 : vector<2x64xf32>
    %139 = arith.addf %137, %138 : vector<2x64xf32>
    %140 = math.tanh %139 : vector<2x64xf32>
    %141 = arith.mulf %136, %140 : vector<2x64xf32>
    %c6_i32 = arith.constant 6 : i32
    %cst_38 = arith.constant dense<0.000000e+00> : vector<2x256xf32>
    %142 = tpu.matmul %141, %23, %cst_38 {dimension_numbers = #tpu.dot_dimension_numbers<[1], [0], [0], [1], [0, 0, 1, 1], [], []>} : vector<2x64xf32>, vector<64x256xf32>, vector<2x256xf32> -> vector<2x256xf32>
    %143 = arith.index_cast %c6_i32 : i32 to index
    %c0_39 = arith.constant 0 : index
    %c0_40 = arith.constant 0 : index
    %144 = vector.load %arg7[%143, %c0_39, %c0_40] : memref<8x2x256xf32, #tpu.memory_space<vmem>>, vector<1x2x256xf32>
    %145 = vector.shape_cast %144 : vector<1x2x256xf32> to vector<2x256xf32>
    %146 = arith.addf %142, %145 : vector<2x256xf32>
    %147 = math.tanh %146 : vector<2x256xf32>
    %148 = arith.mulf %147, %17 : vector<2x256xf32>
    %149 = arith.addf %148, %20 : vector<2x256xf32>
    %150 = vector.extract_strided_slice %149 {offsets = [0, 0], sizes = [2, 64], strides = [1, 1]} : vector<2x256xf32> to vector<2x64xf32>
    %151 = vector.extract_strided_slice %149 {offsets = [0, 64], sizes = [2, 64], strides = [1, 1]} : vector<2x256xf32> to vector<2x64xf32>
    %152 = vector.extract_strided_slice %149 {offsets = [0, 128], sizes = [2, 64], strides = [1, 1]} : vector<2x256xf32> to vector<2x64xf32>
    %153 = vector.extract_strided_slice %149 {offsets = [0, 192], sizes = [2, 64], strides = [1, 1]} : vector<2x256xf32> to vector<2x64xf32>
    %154 = arith.mulf %151, %139 : vector<2x64xf32>
    %155 = arith.mulf %150, %152 : vector<2x64xf32>
    %156 = arith.addf %154, %155 : vector<2x64xf32>
    %157 = math.tanh %156 : vector<2x64xf32>
    %158 = arith.mulf %153, %157 : vector<2x64xf32>
    %c7_i32 = arith.constant 7 : i32
    %cst_41 = arith.constant dense<0.000000e+00> : vector<2x256xf32>
    %159 = tpu.matmul %158, %23, %cst_41 {dimension_numbers = #tpu.dot_dimension_numbers<[1], [0], [0], [1], [0, 0, 1, 1], [], []>} : vector<2x64xf32>, vector<64x256xf32>, vector<2x256xf32> -> vector<2x256xf32>
    %160 = arith.index_cast %c7_i32 : i32 to index
    %c0_42 = arith.constant 0 : index
    %c0_43 = arith.constant 0 : index
    %161 = vector.load %arg7[%160, %c0_42, %c0_43] : memref<8x2x256xf32, #tpu.memory_space<vmem>>, vector<1x2x256xf32>
    %162 = vector.shape_cast %161 : vector<1x2x256xf32> to vector<2x256xf32>
    %163 = arith.addf %159, %162 : vector<2x256xf32>
    %164 = math.tanh %163 : vector<2x256xf32>
    %165 = arith.mulf %164, %17 : vector<2x256xf32>
    %166 = arith.addf %165, %20 : vector<2x256xf32>
    %167 = vector.extract_strided_slice %166 {offsets = [0, 0], sizes = [2, 64], strides = [1, 1]} : vector<2x256xf32> to vector<2x64xf32>
    %168 = vector.extract_strided_slice %166 {offsets = [0, 64], sizes = [2, 64], strides = [1, 1]} : vector<2x256xf32> to vector<2x64xf32>
    %169 = vector.extract_strided_slice %166 {offsets = [0, 128], sizes = [2, 64], strides = [1, 1]} : vector<2x256xf32> to vector<2x64xf32>
    %170 = vector.extract_strided_slice %166 {offsets = [0, 192], sizes = [2, 64], strides = [1, 1]} : vector<2x256xf32> to vector<2x64xf32>
    %171 = arith.mulf %168, %156 : vector<2x64xf32>
    %172 = arith.mulf %167, %169 : vector<2x64xf32>
    %173 = arith.addf %171, %172 : vector<2x64xf32>
    %174 = math.tanh %173 : vector<2x64xf32>
    %175 = arith.mulf %170, %174 : vector<2x64xf32>
    %c8_i32 = arith.constant 8 : i32
    %c0_44 = arith.constant 0 : index
    %c0_45 = arith.constant 0 : index
    %176 = vector.load %arg4[%c0_44, %c0_45] : memref<64x2xf32, #tpu.memory_space<vmem>>, vector<64x2xf32>
    %cst_46 = arith.constant dense<0.000000e+00> : vector<2x2xf32>
    %177 = tpu.matmul %175, %176, %cst_46 {dimension_numbers = #tpu.dot_dimension_numbers<[1], [0], [0], [1], [0, 0, 1, 1], [], []>} : vector<2x64xf32>, vector<64x2xf32>, vector<2x2xf32> -> vector<2x2xf32>
    %c0_47 = arith.constant 0 : index
    %c0_48 = arith.constant 0 : index
    %178 = vector.load %arg5[%c0_47, %c0_48] : memref<1x2xf32, #tpu.memory_space<vmem>>, vector<1x2xf32>
    %179 = vector.broadcast %178 : vector<1x2xf32> to vector<2x2xf32>
    %180 = arith.addf %177, %179 : vector<2x2xf32>
    %c0_49 = arith.constant 0 : index
    %c0_50 = arith.constant 0 : index
    %181 = vector.load %arg6[%c0_49, %c0_50] : memref<2x2xf32, #tpu.memory_space<vmem>>, vector<2x2xf32>
    tpu.vector_store %arg6[%c0_49, %c0_50], %180 {strides = array<i32>} : memref<2x2xf32, #tpu.memory_space<vmem>>, vector<2x2xf32>,
    return
  }
}

</mosaic_0001>

<llo_original>
// kernel: tpu_custom_call.1
$region0: #{tpu_custom_call.1}
  #allocation0 [shape = 'u32[]', space=smem, size = 0x4, offset = 0x4, fixed_abs, tag = 'smem constant byte address 0x4 - core index']
  #allocation1 [shape = 'u32[144,128]{1,0:T(1,128)}', space=vmem, size = 0x12000, scoped, tag = 'internal scratch']
  #allocation2 [shape = 'f32[8,2,256]{2,1,0:T(2,128)}', space=vmem, size = 0x4000, scoped, tag = 'scratch operand']
  %s0 = inlined_call_operand.vmem [shape: f32[8,2,1], index: 0, kind: input, shape index: {}]
  %s1 = inlined_call_operand.vmem [shape: f32[1,256], index: 1, kind: input, shape index: {}]
  %s2 = inlined_call_operand.hbm [shape: f32[64,256], index: 2, kind: input, shape index: {}]
  %s3 = inlined_call_operand.vmem [shape: f32[1,256], index: 3, kind: input, shape index: {}]
  %s4 = inlined_call_operand.vmem [shape: f32[64,2], index: 4, kind: input, shape index: {}]
  %s5 = inlined_call_operand.vmem [shape: f32[1,2], index: 5, kind: input, shape index: {}]
  %s6 = inlined_call_operand.hbm [shape: f32[2,2], index: 6, kind: output, shape index: {}]
  %s7 = sld [smem:[#allocation0]]
  $region38: #{tpu_custom_call.1} parent=0
    _
  %s9 = ssub.s32 1, %s7
  %s10 = scalar_select 0, %s9, %s7
  $region1: #{tpu_custom_call.1} parent=0
    #allocation3 [shape = 'u8[65536]{0}', space=vmem, size = 0x10000, scoped, tag = 'input window, operand 2, single buffered']
    #allocation4 [shape = 's32[1]{0}', space=sflag, size = 0x4, scoped, tag = 'scoped memory for tpu_custom_call.1']
    #allocation5 [shape = 's32[1]{0}', space=sflag, size = 0x4, scoped, tag = 'scoped memory for tpu_custom_call.1']
    #allocation6 [shape = 'u8[1024]{0}', space=vmem, size = 0x400, scoped, tag = 'output window, operand 0, single buffered']
    %11 = vsyncpa [#allocation4], 0
    %12 = vsyncpa [#allocation5], 0
    // Predicated region
    $region2: #{tpu_custom_call.1} parent=1 // pred_check
      _
    $region3: #{tpu_custom_call.1} parent=1 // pred_check_branch
      %14 = sbr.rel (0) target = $region5
    $region4: #{tpu_custom_call.1} parent=1 // pred_region
      _
    $region5: #{tpu_custom_call.1} parent=1 // pred_fallthru
      _
    // Predicated region
    $region6: #{tpu_custom_call.1} parent=1 // pred_check
      _
    $region7: #{tpu_custom_call.1} parent=1 // pred_check_branch
      %16 = sbr.rel (0) target = $region9
    $region8: #{tpu_custom_call.1} parent=1 // pred_region
      _
    $region9: #{tpu_custom_call.1} parent=1 // pred_fallthru
      _
    // Predicated region
    $region10: #{tpu_custom_call.1} parent=1 // pred_check
      _
    $region11: #{tpu_custom_call.1} parent=1 // pred_check_branch
      %18 = sbr.rel (0) target = $region13
    $region12: #{tpu_custom_call.1} parent=1 // pred_region
      %s20 = ssub.s32 2048, 2048
      %21 = vsyncadd [#allocation4], %s20
      %s22 = sshll.u32 [#allocation3], 4
      %s23 = int_to_ptr.vmem [resolvable:$true] %s22
      %28 = dma.hbm_to_vmem [thread:$0]  %s2, 2048, %s23, [#allocation4], 256, 256, 16
    $region13: #{tpu_custom_call.1} parent=1 // pred_fallthru
      _
    // Predicated region
    $region14: #{tpu_custom_call.1} parent=1 // pred_check
      _
    $region15: #{tpu_custom_call.1} parent=1 // pred_check_branch
      %30 = sbr.rel (0) target = $region17
    $region16: #{tpu_custom_call.1} parent=1 // pred_region
      _
    $region17: #{tpu_custom_call.1} parent=1 // pred_fallthru
      _
    // Predicated region
    $region18: #{tpu_custom_call.1} parent=1 // pred_check
      _
    $region19: #{tpu_custom_call.1} parent=1 // pred_check_branch
      %32 = sbr.rel (0) target = $region21
    $region20: #{tpu_custom_call.1} parent=1 // pred_region
      _
    $region21: #{tpu_custom_call.1} parent=1 // pred_fallthru
      _
    // Predicated region
    $region22: #{tpu_custom_call.1} parent=1 // pred_check
      _
    $region23: #{tpu_custom_call.1} parent=1 // pred_check_branch
      %34 = sbr.rel (0) target = $region25
    $region24: #{tpu_custom_call.1} parent=1 // pred_region
      _
    $region25: #{tpu_custom_call.1} parent=1 // pred_fallthru
      _
    // Predicated region
    $region26: #{tpu_custom_call.1} parent=1 // pred_check
      _
    $region27: #{tpu_custom_call.1} parent=1 // pred_check_branch
      %36 = sbr.rel (0) target = $region29
    $region28: #{tpu_custom_call.1} parent=1 // pred_region
      %37 = dma.done [#allocation4], 2048
    $region29: #{tpu_custom_call.1} parent=1 // pred_fallthru
      _
    %v38 = vlaneseq
    %v39 = vand.u32 %v38, 127
    %v40 = vadd.s32 %v39, 128
    %vm41 = vcmp.ge.s32.totalorder %v39, 128
    %vm42 = vcmp.ge.s32.totalorder %v40, 128
    %vm43 = vcmp.lt.s32.totalorder %v39, 192
    %vm44 = vcmp.lt.s32.totalorder %v40, 192
    %vm45 = vmand %vm41, %vm43
    %vm46 = vmand %vm42, %vm44
    %v47 = vsel %vm45, 1.0, 0.5
    %v48 = vsel %vm46, 1.0, 0.5
    %v49 = vsel %vm45, 0.0, 0.5
    %v50 = vsel %vm46, 0.0, 0.5
    %v51 = vld [vmem:[#allocation3] sm:$0xff]
    %v52 = vld [vmem:[#allocation3 + $0x8] sm:$0xff]
    %v53 = vld [vmem:[#allocation3 + $0x10] sm:$0xff]
    %v54 = vld [vmem:[#allocation3 + $0x18] sm:$0xff]
    %v55 = vld [vmem:[#allocation3 + $0x20] sm:$0xff]
    %v56 = vld [vmem:[#allocation3 + $0x28] sm:$0xff]
    %v57 = vld [vmem:[#allocation3 + $0x30] sm:$0xff]
    %v58 = vld [vmem:[#allocation3 + $0x38] sm:$0xff]
    %v59 = vld [vmem:[#allocation3 + $0x40] sm:$0xff]
    %v60 = vld [vmem:[#allocation3 + $0x48] sm:$0xff]
    %v61 = vld [vmem:[#allocation3 + $0x50] sm:$0xff]
    %v62 = vld [vmem:[#allocation3 + $0x58] sm:$0xff]
    %v63 = vld [vmem:[#allocation3 + $0x60] sm:$0xff]
    %v64 = vld [vmem:[#allocation3 + $0x68] sm:$0xff]
    %v65 = vld [vmem:[#allocation3 + $0x70] sm:$0xff]
    %v66 = vld [vmem:[#allocation3 + $0x78] sm:$0xff]
    %v67 = vmul.f32 %v51, %v47
    %v68 = vmul.f32 %v52, %v48
    %v69 = vmul.f32 %v53, %v47
    %v70 = vmul.f32 %v54, %v48
    %v71 = vmul.f32 %v55, %v47
    %v72 = vmul.f32 %v56, %v48
    %v73 = vmul.f32 %v57, %v47
    %v74 = vmul.f32 %v58, %v48
    %v75 = vmul.f32 %v59, %v47
    %v76 = vmul.f32 %v60, %v48
    %v77 = vmul.f32 %v61, %v47
    %v78 = vmul.f32 %v62, %v48
    %v79 = vmul.f32 %v63, %v47
    %v80 = vmul.f32 %v64, %v48
    %v81 = vmul.f32 %v65, %v47
    %v82 = vmul.f32 %v66, %v48
    %v83 = vld [vmem:[%s0] sm:$0x3]
    %v84 = vld [vmem:[%s0 + $0x2] sm:$0x3]
    %v85 = vld [vmem:[%s0 + $0x4] sm:$0x3]
    %v86 = vld [vmem:[%s0 + $0x6] sm:$0x3]
    %v87 = vld [vmem:[%s0 + $0x8] sm:$0x3]
    %v88 = vld [vmem:[%s0 + $0xa] sm:$0x3]
    %v89 = vld [vmem:[%s0 + $0xc] sm:$0x3]
    %v90 = vld [vmem:[%s0 + $0xe] sm:$0x3]
    %v91 = vld [vmem:[%s1] sm:$0x3]
    %93 = vset.pattern.permute.xlu0 0
    %94 = vperm.xlu0 %93, %v83
    %v95 = vpop.permute.xlu0 %94
    %98 = vset.pattern.permute.xlu0 0
    %99 = vperm.xlu0 %98, %v84
    %v100 = vpop.permute.xlu0 %99
    %103 = vset.pattern.permute.xlu0 0
    %104 = vperm.xlu0 %103, %v85
    %v105 = vpop.permute.xlu0 %104
    %108 = vset.pattern.permute.xlu0 0
    %109 = vperm.xlu0 %108, %v86
    %v110 = vpop.permute.xlu0 %109
    %113 = vset.pattern.permute.xlu0 0
    %114 = vperm.xlu0 %113, %v87
    %v115 = vpop.permute.xlu0 %114
    %118 = vset.pattern.permute.xlu0 0
    %119 = vperm.xlu0 %118, %v88
    %v120 = vpop.permute.xlu0 %119
    %123 = vset.pattern.permute.xlu0 0
    %124 = vperm.xlu0 %123, %v89
    %v125 = vpop.permute.xlu0 %124
    %128 = vset.pattern.permute.xlu0 0
    %129 = vperm.xlu0 %128, %v90
    %v130 = vpop.permute.xlu0 %129
    %v133 = vlaneseq
    %v134 = vshrl.u32 %v133, 7
    %v135 = vsub.s32 0, %v134
    %v136 = vrot.slane %v91, %v135
    %v137 = vlaneseq
    %v138 = vshrl.u32 %v137, 7
    %v139 = vsub.s32 1, %v138
    %v140 = vrot.slane %v91, %v139
    %v143 = vmul.f32 %v95, %v136
    %v144 = vmul.f32 %v95, %v140
    %v145 = vmul.f32 %v100, %v136
    %v146 = vmul.f32 %v100, %v140
    %v147 = vmul.f32 %v105, %v136
    %v148 = vmul.f32 %v105, %v140
    %v149 = vmul.f32 %v110, %v136
    %v150 = vmul.f32 %v110, %v140
    %v151 = vmul.f32 %v115, %v136
    %v152 = vmul.f32 %v115, %v140
    %v153 = vmul.f32 %v120, %v136
    %v154 = vmul.f32 %v120, %v140
    %v155 = vmul.f32 %v125, %v136
    %v156 = vmul.f32 %v125, %v140
    %v157 = vmul.f32 %v130, %v136
    %v158 = vmul.f32 %v130, %v140
    %v159 = vld [vmem:[%s3] sm:$0x3]
    %v161 = vlaneseq
    %v162 = vshrl.u32 %v161, 7
    %v163 = vsub.s32 0, %v162
    %v164 = vrot.slane %v159, %v163
    %v165 = vlaneseq
    %v166 = vshrl.u32 %v165, 7
    %v167 = vsub.s32 1, %v166
    %v168 = vrot.slane %v159, %v167
    %v171 = vadd.f32 %v143, %v164
    %v172 = vadd.f32 %v144, %v168
    %v173 = vadd.f32 %v145, %v164
    %v174 = vadd.f32 %v146, %v168
    %v175 = vadd.f32 %v147, %v164
    %v176 = vadd.f32 %v148, %v168
    %v177 = vadd.f32 %v149, %v164
    %v178 = vadd.f32 %v150, %v168
    %v179 = vadd.f32 %v151, %v164
    %v180 = vadd.f32 %v152, %v168
    %v181 = vadd.f32 %v153, %v164
    %v182 = vadd.f32 %v154, %v168
    %v183 = vadd.f32 %v155, %v164
    %v184 = vadd.f32 %v156, %v168
    %v185 = vadd.f32 %v157, %v164
    %v186 = vadd.f32 %v158, %v168
    %v187 = vmul.f32 %v171, %v47
    %v188 = vmul.f32 %v172, %v48
    %v189 = vmul.f32 %v173, %v47
    %v190 = vmul.f32 %v174, %v48
    %v191 = vmul.f32 %v175, %v47
    %v192 = vmul.f32 %v176, %v48
    %v193 = vmul.f32 %v177, %v47
    %v194 = vmul.f32 %v178, %v48
    %v195 = vmul.f32 %v179, %v47
    %v196 = vmul.f32 %v180, %v48
    %v197 = vmul.f32 %v181, %v47
    %v198 = vmul.f32 %v182, %v48
    %v199 = vmul.f32 %v183, %v47
    %v200 = vmul.f32 %v184, %v48
    %v201 = vmul.f32 %v185, %v47
    %v202 = vmul.f32 %v186, %v48
    %v219 = vcombine.low %v187, %v188
    %v221 = vunpack.c.l.s4 1983009808
    %v222 = vunpack.c.0.s8 %v221
    %v223 = vlaneseq
    %v224 = vshrl.u32 %v223, 7
    %v225 = vsub.s32 %v222, %v224
    %v226 = vrot.slane %v219, %v225
    %v227 = vcombine.low %v189, %v190
    %v229 = vunpack.c.l.s4 1983009808
    %v230 = vunpack.c.0.s8 %v229
    %v231 = vlaneseq
    %v232 = vshrl.u32 %v231, 7
    %v233 = vsub.s32 %v230, %v232
    %v234 = vrot.slane %v227, %v233
    %v235 = vcombine.low %v191, %v192
    %v237 = vunpack.c.l.s4 1983009808
    %v238 = vunpack.c.0.s8 %v237
    %v239 = vlaneseq
    %v240 = vshrl.u32 %v239, 7
    %v241 = vsub.s32 %v238, %v240
    %v242 = vrot.slane %v235, %v241
    %v243 = vcombine.low %v193, %v194
    %v245 = vunpack.c.l.s4 1983009808
    %v246 = vunpack.c.0.s8 %v245
    %v247 = vlaneseq
    %v248 = vshrl.u32 %v247, 7
    %v249 = vsub.s32 %v246, %v248
    %v250 = vrot.slane %v243, %v249
    %v251 = vcombine.low %v195, %v196
    %v253 = vunpack.c.l.s4 1983009808
    %v254 = vunpack.c.0.s8 %v253
    %v255 = vlaneseq
    %v256 = vshrl.u32 %v255, 7
    %v257 = vsub.s32 %v254, %v256
    %v258 = vrot.slane %v251, %v257
    %v259 = vcombine.low %v197, %v198
    %v261 = vunpack.c.l.s4 1983009808
    %v262 = vunpack.c.0.s8 %v261
    %v263 = vlaneseq
    %v264 = vshrl.u32 %v263, 7
    %v265 = vsub.s32 %v262, %v264
    %v266 = vrot.slane %v259, %v265
    %v267 = vcombine.low %v199, %v200
    %v269 = vunpack.c.l.s4 1983009808
    %v270 = vunpack.c.0.s8 %v269
    %v271 = vlaneseq
    %v272 = vshrl.u32 %v271, 7
    %v273 = vsub.s32 %v270, %v272
    %v274 = vrot.slane %v267, %v273
    %v275 = vcombine.low %v201, %v202
    %v277 = vunpack.c.l.s4 1983009808
    %v278 = vunpack.c.0.s8 %v277
    %v279 = vlaneseq
    %v280 = vshrl.u32 %v279, 7
    %v281 = vsub.s32 %v278, %v280
    %v282 = vrot.slane %v275, %v281
    %291 = vst [vmem:[#allocation2] sm:$0xf] %v226
    %292 = vst [vmem:[#allocation2 + $0x4] sm:$0xf] %v234
    %293 = vst [vmem:[#allocation2 + $0x8] sm:$0xf] %v242
    %294 = vst [vmem:[#allocation2 + $0xc] sm:$0xf] %v250
    %295 = vst [vmem:[#allocation2 + $0x10] sm:$0xf] %v258
    %296 = vst [vmem:[#allocation2 + $0x14] sm:$0xf] %v266
    %297 = vst [vmem:[#allocation2 + $0x18] sm:$0xf] %v274
    %298 = vst [vmem:[#allocation2 + $0x1c] sm:$0xf] %v282
    %v299 = vld [vmem:[#allocation2] sm:$0xf]
    %v302 = vunpack.c.l.s4 1983009808
    %v303 = vunpack.c.0.s8 %v302
    %v304 = vlaneseq
    %v305 = vshrl.u32 %v304, 7
    %v306 = vsub.s32 %v303, %v305
    %v307 = vrot.slane %v299, %v306
    %v308 = vcombine.high %v307, %v307
    %vm311 = vcmask 523264
    %v313 = vsel %vm311, 0.0, 0
    %315 = vmatprep.subr.mxu0 %v68
    %316 = vmatpush1.msra.mxu0 %v67
    %317 = vmatprep.subr.mxu0 %v70
    %318 = vmatpush1.msra.mxu0 %v69
    %319 = vmatprep.subr.mxu0 %v72
    %320 = vmatpush1.msra.mxu0 %v71
    %321 = vmatprep.subr.mxu0 %v74
    %322 = vmatpush1.msra.mxu0 %v73
    %323 = vmatprep.subr.mxu0 %v76
    %324 = vmatpush1.msra.mxu0 %v75
    %325 = vmatprep.subr.mxu0 %v78
    %326 = vmatpush1.msra.mxu0 %v77
    %327 = vmatprep.subr.mxu0 %v80
    %328 = vmatpush1.msra.mxu0 %v79
    %329 = vmatprep.subr.mxu0 %v82
    %330 = vmatpush1.msra.mxu0 %v81
    %331 = vmatprep.subr.mxu0 0.0
    %332 = vmatpush1.msra.mxu0 0.0
    %333 = vmatprep.subr.mxu0 0.0
    %334 = vmatpush1.msra.mxu0 0.0
    %335 = vmatprep.subr.mxu0 0.0
    %336 = vmatpush1.msra.mxu0 0.0
    %337 = vmatprep.subr.mxu0 0.0
    %338 = vmatpush1.msra.mxu0 0.0
    %339 = vmatprep.subr.mxu0 0.0
    %340 = vmatpush1.msra.mxu0 0.0
    %341 = vmatprep.subr.mxu0 0.0
    %342 = vmatpush1.msra.mxu0 0.0
    %343 = vmatprep.subr.mxu0 0.0
    %344 = vmatpush1.msra.mxu0 0.0
    %345 = vmatprep.subr.mxu0 0.0
    %346 = vmatpush1.msra.mxu0 0.0
    %347 = vmatprep.subr.mxu0 0.0
    %348 = vmatpush1.msra.mxu0 0.0
    %349 = vmatprep.subr.mxu0 0.0
    %350 = vmatpush1.msra.mxu0 0.0
    %351 = vmatprep.subr.mxu0 0.0
    %352 = vmatpush1.msra.mxu0 0.0
    %353 = vmatprep.subr.mxu0 0.0
    %354 = vmatpush1.msra.mxu0 0.0
    %355 = vmatprep.subr.mxu0 0.0
    %356 = vmatpush1.msra.mxu0 0.0
    %357 = vmatprep.subr.mxu0 0.0
    %358 = vmatpush1.msra.mxu0 0.0
    %359 = vmatprep.subr.mxu0 0.0
    %360 = vmatpush1.msra.mxu0 0.0
    %361 = vmatprep.subr.mxu0 0.0
    %362 = vmatpush1.msra.mxu0 0.0
    %363 = vmatprep.subr.mxu0 0.0
    %364 = vmatpush1.msra.mxu0 0.0
    %365 = vmatprep.subr.mxu0 0.0
    %366 = vmatpush1.msra.mxu0 0.0
    %367 = vmatprep.subr.mxu0 0.0
    %368 = vmatpush1.msra.mxu0 0.0
    %369 = vmatprep.subr.mxu0 0.0
    %370 = vmatpush1.msra.mxu0 0.0
    %371 = vmatprep.subr.mxu0 0.0
    %372 = vmatpush1.msra.mxu0 0.0
    %373 = vmatprep.subr.mxu0 0.0
    %374 = vmatpush1.msra.mxu0 0.0
    %375 = vmatprep.subr.mxu0 0.0
    %376 = vmatpush1.msra.mxu0 0.0
    %377 = vmatprep.subr.mxu0 0.0
    %378 = vmatpush1.msra.mxu0 0.0
    %379 = vmatprep.mubr.f32.mxu0 0.0
    %380 = vmatmul.mubr.f32.gmra.mrb[0].mxu0 %v313
    %v381 = vpop.f32.mrb[0].mxu0
    %v382 = vadd.f32 %v307, %v381
    %v383 = vpop.f32.mrb[0].mxu0
    %v384 = vadd.f32 %v308, %v383
    %385 = vdwg.mxu0
    %v386 = vtanh.pop %v382
    %v387 = vtanh.pop %v384
    %v388 = vmul.f32 %v386, %v47
    %v389 = vmul.f32 %v387, %v48
    %v390 = vadd.f32 %v388, %v49
    %v391 = vadd.f32 %v389, %v50
    %v392 = vmul.f32 %v390, 0.0
    %v393 = vmul.f32 %v390, %v391
    %395 = vrot.lane.b32.xlu0 %v393, 64
    %v396 = vpop.permute.xlu0 %395
    %v398 = vadd.f32 %v392, %v396
    %v399 = vtanh.pop %v398
    %v400 = vmul.f32 %v391, %v399
    %s401 = scalar_lea.vmem [#allocation2], 4
    %v402 = vld [vmem:[%s401] sm:$0xf]
    %404 = vrot.lane.b32.xlu0 %v400, 64
    %v405 = vpop.permute.xlu0 %404
    %v408 = vunpack.c.l.s4 1983009808
    %v409 = vunpack.c.0.s8 %v408
    %v410 = vlaneseq
    %v411 = vshrl.u32 %v410, 7
    %v412 = vsub.s32 %v409, %v411
    %v413 = vrot.slane %v402, %v412
    %v414 = vcombine.high %v413, %v413
    %v417 = vsel %vm311, %v405, 0
    %419 = vmatprep.subr.mxu0 %v68
    %420 = vmatpush1.msra.mxu0 %v67
    %421 = vmatprep.subr.mxu0 %v70
    %422 = vmatpush1.msra.mxu0 %v69
    %423 = vmatprep.subr.mxu0 %v72
    %424 = vmatpush1.msra.mxu0 %v71
    %425 = vmatprep.subr.mxu0 %v74
    %426 = vmatpush1.msra.mxu0 %v73
    %427 = vmatprep.subr.mxu0 %v76
    %428 = vmatpush1.msra.mxu0 %v75
    %429 = vmatprep.subr.mxu0 %v78
    %430 = vmatpush1.msra.mxu0 %v77
    %431 = vmatprep.subr.mxu0 %v80
    %432 = vmatpush1.msra.mxu0 %v79
    %433 = vmatprep.subr.mxu0 %v82
    %434 = vmatpush1.msra.mxu0 %v81
    %435 = vmatprep.subr.mxu0 0.0
    %436 = vmatpush1.msra.mxu0 0.0
    %437 = vmatprep.subr.mxu0 0.0
    %438 = vmatpush1.msra.mxu0 0.0
    %439 = vmatprep.subr.mxu0 0.0
    %440 = vmatpush1.msra.mxu0 0.0
    %441 = vmatprep.subr.mxu0 0.0
    %442 = vmatpush1.msra.mxu0 0.0
    %443 = vmatprep.subr.mxu0 0.0
    %444 = vmatpush1.msra.mxu0 0.0
    %445 = vmatprep.subr.mxu0 0.0
    %446 = vmatpush1.msra.mxu0 0.0
    %447 = vmatprep.subr.mxu0 0.0
    %448 = vmatpush1.msra.mxu0 0.0
    %449 = vmatprep.subr.mxu0 0.0
    %450 = vmatpush1.msra.mxu0 0.0
    %451 = vmatprep.subr.mxu0 0.0
    %452 = vmatpush1.msra.mxu0 0.0
    %453 = vmatprep.subr.mxu0 0.0
    %454 = vmatpush1.msra.mxu0 0.0
    %455 = vmatprep.subr.mxu0 0.0
    %456 = vmatpush1.msra.mxu0 0.0
    %457 = vmatprep.subr.mxu0 0.0
    %458 = vmatpush1.msra.mxu0 0.0
    %459 = vmatprep.subr.mxu0 0.0
    %460 = vmatpush1.msra.mxu0 0.0
    %461 = vmatprep.subr.mxu0 0.0
    %462 = vmatpush1.msra.mxu0 0.0
    %463 = vmatprep.subr.mxu0 0.0
    %464 = vmatpush1.msra.mxu0 0.0
    %465 = vmatprep.subr.mxu0 0.0
    %466 = vmatpush1.msra.mxu0 0.0
    %467 = vmatprep.subr.mxu0 0.0
    %468 = vmatpush1.msra.mxu0 0.0
    %469 = vmatprep.subr.mxu0 0.0
    %470 = vmatpush1.msra.mxu0 0.0
    %471 = vmatprep.subr.mxu0 0.0
    %472 = vmatpush1.msra.mxu0 0.0
    %473 = vmatprep.subr.mxu0 0.0
    %474 = vmatpush1.msra.mxu0 0.0
    %475 = vmatprep.subr.mxu0 0.0
    %476 = vmatpush1.msra.mxu0 0.0
    %477 = vmatprep.subr.mxu0 0.0
    %478 = vmatpush1.msra.mxu0 0.0
    %479 = vmatprep.subr.mxu0 0.0
    %480 = vmatpush1.msra.mxu0 0.0
    %481 = vmatprep.subr.mxu0 0.0
    %482 = vmatpush1.msra.mxu0 0.0
    %483 = vmatprep.mubr.f32.mxu0 0.0
    %484 = vmatmul.mubr.f32.gmra.mrb[0].mxu0 %v417
    %v485 = vpop.f32.mrb[0].mxu0
    %v486 = vadd.f32 %v413, %v485
    %v487 = vpop.f32.mrb[0].mxu0
    %v488 = vadd.f32 %v414, %v487
    %489 = vdwg.mxu0
    %v490 = vtanh.pop %v486
    %v491 = vtanh.pop %v488
    %v492 = vmul.f32 %v490, %v47
    %v493 = vmul.f32 %v491, %v48
    %v494 = vadd.f32 %v492, %v49
    %v495 = vadd.f32 %v493, %v50
    %v496 = vmul.f32 %v494, %v398
    %v497 = vmul.f32 %v494, %v495
    %499 = vrot.lane.b32.xlu0 %v497, 64
    %v500 = vpop.permute.xlu0 %499
    %v502 = vadd.f32 %v496, %v500
    %v503 = vtanh.pop %v502
    %v504 = vmul.f32 %v495, %v503
    %s505 = scalar_lea.vmem [#allocation2], 8
    %v506 = vld [vmem:[%s505] sm:$0xf]
    %508 = vrot.lane.b32.xlu0 %v504, 64
    %v509 = vpop.permute.xlu0 %508
    %v512 = vunpack.c.l.s4 1983009808
    %v513 = vunpack.c.0.s8 %v512
    %v514 = vlaneseq
    %v515 = vshrl.u32 %v514, 7
    %v516 = vsub.s32 %v513, %v515
    %v517 = vrot.slane %v506, %v516
    %v518 = vcombine.high %v517, %v517
    %v521 = vsel %vm311, %v509, 0
    %523 = vmatprep.subr.mxu0 %v68
    %524 = vmatpush1.msra.mxu0 %v67
    %525 = vmatprep.subr.mxu0 %v70
    %526 = vmatpush1.msra.mxu0 %v69
    %527 = vmatprep.subr.mxu0 %v72
    %528 = vmatpush1.msra.mxu0 %v71
    %529 = vmatprep.subr.mxu0 %v74
    %530 = vmatpush1.msra.mxu0 %v73
    %531 = vmatprep.subr.mxu0 %v76
    %532 = vmatpush1.msra.mxu0 %v75
    %533 = vmatprep.subr.mxu0 %v78
    %534 = vmatpush1.msra.mxu0 %v77
    %535 = vmatprep.subr.mxu0 %v80
    %536 = vmatpush1.msra.mxu0 %v79
    %537 = vmatprep.subr.mxu0 %v82
    %538 = vmatpush1.msra.mxu0 %v81
    %539 = vmatprep.subr.mxu0 0.0
    %540 = vmatpush1.msra.mxu0 0.0
    %541 = vmatprep.subr.mxu0 0.0
    %542 = vmatpush1.msra.mxu0 0.0
    %543 = vmatprep.subr.mxu0 0.0
    %544 = vmatpush1.msra.mxu0 0.0
    %545 = vmatprep.subr.mxu0 0.0
    %546 = vmatpush1.msra.mxu0 0.0
    %547 = vmatprep.subr.mxu0 0.0
    %548 = vmatpush1.msra.mxu0 0.0
    %549 = vmatprep.subr.mxu0 0.0
    %550 = vmatpush1.msra.mxu0 0.0
    %551 = vmatprep.subr.mxu0 0.0
    %552 = vmatpush1.msra.mxu0 0.0
    %553 = vmatprep.subr.mxu0 0.0
    %554 = vmatpush1.msra.mxu0 0.0
    %555 = vmatprep.subr.mxu0 0.0
    %556 = vmatpush1.msra.mxu0 0.0
    %557 = vmatprep.subr.mxu0 0.0
    %558 = vmatpush1.msra.mxu0 0.0
    %559 = vmatprep.subr.mxu0 0.0
    %560 = vmatpush1.msra.mxu0 0.0
    %561 = vmatprep.subr.mxu0 0.0
    %562 = vmatpush1.msra.mxu0 0.0
    %563 = vmatprep.subr.mxu0 0.0
    %564 = vmatpush1.msra.mxu0 0.0
    %565 = vmatprep.subr.mxu0 0.0
    %566 = vmatpush1.msra.mxu0 0.0
    %567 = vmatprep.subr.mxu0 0.0
    %568 = vmatpush1.msra.mxu0 0.0
    %569 = vmatprep.subr.mxu0 0.0
    %570 = vmatpush1.msra.mxu0 0.0
    %571 = vmatprep.subr.mxu0 0.0
    %572 = vmatpush1.msra.mxu0 0.0
    %573 = vmatprep.subr.mxu0 0.0
    %574 = vmatpush1.msra.mxu0 0.0
    %575 = vmatprep.subr.mxu0 0.0
    %576 = vmatpush1.msra.mxu0 0.0
    %577 = vmatprep.subr.mxu0 0.0
    %578 = vmatpush1.msra.mxu0 0.0
    %579 = vmatprep.subr.mxu0 0.0
    %580 = vmatpush1.msra.mxu0 0.0
    %581 = vmatprep.subr.mxu0 0.0
    %582 = vmatpush1.msra.mxu0 0.0
    %583 = vmatprep.subr.mxu0 0.0
    %584 = vmatpush1.msra.mxu0 0.0
    %585 = vmatprep.subr.mxu0 0.0
    %586 = vmatpush1.msra.mxu0 0.0
    %587 = vmatprep.mubr.f32.mxu0 0.0
    %588 = vmatmul.mubr.f32.gmra.mrb[0].mxu0 %v521
    %v589 = vpop.f32.mrb[0].mxu0
    %v590 = vadd.f32 %v517, %v589
    %v591 = vpop.f32.mrb[0].mxu0
    %v592 = vadd.f32 %v518, %v591
    %593 = vdwg.mxu0
    %v594 = vtanh.pop %v590
    %v595 = vtanh.pop %v592
    %v596 = vmul.f32 %v594, %v47
    %v597 = vmul.f32 %v595, %v48
    %v598 = vadd.f32 %v596, %v49
    %v599 = vadd.f32 %v597, %v50
    %v600 = vmul.f32 %v598, %v502
    %v601 = vmul.f32 %v598, %v599
    %603 = vrot.lane.b32.xlu0 %v601, 64
    %v604 = vpop.permute.xlu0 %603
    %v606 = vadd.f32 %v600, %v604
    %v607 = vtanh.pop %v606
    %v608 = vmul.f32 %v599, %v607
    %s609 = scalar_lea.vmem [#allocation2], 12
    %v610 = vld [vmem:[%s609] sm:$0xf]
    %612 = vrot.lane.b32.xlu0 %v608, 64
    %v613 = vpop.permute.xlu0 %612
    %v616 = vunpack.c.l.s4 1983009808
    %v617 = vunpack.c.0.s8 %v616
    %v618 = vlaneseq
    %v619 = vshrl.u32 %v618, 7
    %v620 = vsub.s32 %v617, %v619
    %v621 = vrot.slane %v610, %v620
    %v622 = vcombine.high %v621, %v621
    %v625 = vsel %vm311, %v613, 0
    %627 = vmatprep.subr.mxu0 %v68
    %628 = vmatpush1.msra.mxu0 %v67
    %629 = vmatprep.subr.mxu0 %v70
    %630 = vmatpush1.msra.mxu0 %v69
    %631 = vmatprep.subr.mxu0 %v72
    %632 = vmatpush1.msra.mxu0 %v71
    %633 = vmatprep.subr.mxu0 %v74
    %634 = vmatpush1.msra.mxu0 %v73
    %635 = vmatprep.subr.mxu0 %v76
    %636 = vmatpush1.msra.mxu0 %v75
    %637 = vmatprep.subr.mxu0 %v78
    %638 = vmatpush1.msra.mxu0 %v77
    %639 = vmatprep.subr.mxu0 %v80
    %640 = vmatpush1.msra.mxu0 %v79
    %641 = vmatprep.subr.mxu0 %v82
    %642 = vmatpush1.msra.mxu0 %v81
    %643 = vmatprep.subr.mxu0 0.0
    %644 = vmatpush1.msra.mxu0 0.0
    %645 = vmatprep.subr.mxu0 0.0
    %646 = vmatpush1.msra.mxu0 0.0
    %647 = vmatprep.subr.mxu0 0.0
    %648 = vmatpush1.msra.mxu0 0.0
    %649 = vmatprep.subr.mxu0 0.0
    %650 = vmatpush1.msra.mxu0 0.0
    %651 = vmatprep.subr.mxu0 0.0
    %652 = vmatpush1.msra.mxu0 0.0
    %653 = vmatprep.subr.mxu0 0.0
    %654 = vmatpush1.msra.mxu0 0.0
    %655 = vmatprep.subr.mxu0 0.0
    %656 = vmatpush1.msra.mxu0 0.0
    %657 = vmatprep.subr.mxu0 0.0
    %658 = vmatpush1.msra.mxu0 0.0
    %659 = vmatprep.subr.mxu0 0.0
    %660 = vmatpush1.msra.mxu0 0.0
    %661 = vmatprep.subr.mxu0 0.0
    %662 = vmatpush1.msra.mxu0 0.0
    %663 = vmatprep.subr.mxu0 0.0
    %664 = vmatpush1.msra.mxu0 0.0
    %665 = vmatprep.subr.mxu0 0.0
    %666 = vmatpush1.msra.mxu0 0.0
    %667 = vmatprep.subr.mxu0 0.0
    %668 = vmatpush1.msra.mxu0 0.0
    %669 = vmatprep.subr.mxu0 0.0
    %670 = vmatpush1.msra.mxu0 0.0
    %671 = vmatprep.subr.mxu0 0.0
    %672 = vmatpush1.msra.mxu0 0.0
    %673 = vmatprep.subr.mxu0 0.0
    %674 = vmatpush1.msra.mxu0 0.0
    %675 = vmatprep.subr.mxu0 0.0
    %676 = vmatpush1.msra.mxu0 0.0
    %677 = vmatprep.subr.mxu0 0.0
    %678 = vmatpush1.msra.mxu0 0.0
    %679 = vmatprep.subr.mxu0 0.0
    %680 = vmatpush1.msra.mxu0 0.0
    %681 = vmatprep.subr.mxu0 0.0
    %682 = vmatpush1.msra.mxu0 0.0
    %683 = vmatprep.subr.mxu0 0.0
    %684 = vmatpush1.msra.mxu0 0.0
    %685 = vmatprep.subr.mxu0 0.0
    %686 = vmatpush1.msra.mxu0 0.0
    %687 = vmatprep.subr.mxu0 0.0
    %688 = vmatpush1.msra.mxu0 0.0
    %689 = vmatprep.subr.mxu0 0.0
    %690 = vmatpush1.msra.mxu0 0.0
    %691 = vmatprep.mubr.f32.mxu0 0.0
    %692 = vmatmul.mubr.f32.gmra.mrb[0].mxu0 %v625
    %v693 = vpop.f32.mrb[0].mxu0
    %v694 = vadd.f32 %v621, %v693
    %v695 = vpop.f32.mrb[0].mxu0
    %v696 = vadd.f32 %v622, %v695
    %697 = vdwg.mxu0
    %v698 = vtanh.pop %v694
    %v699 = vtanh.pop %v696
    %v700 = vmul.f32 %v698, %v47
    %v701 = vmul.f32 %v699, %v48
    %v702 = vadd.f32 %v700, %v49
    %v703 = vadd.f32 %v701, %v50
    %v704 = vmul.f32 %v702, %v606
    %v705 = vmul.f32 %v702, %v703
    %707 = vrot.lane.b32.xlu0 %v705, 64
    %v708 = vpop.permute.xlu0 %707
    %v710 = vadd.f32 %v704, %v708
    %v711 = vtanh.pop %v710
    %v712 = vmul.f32 %v703, %v711
    %s713 = scalar_lea.vmem [#allocation2], 16
    %v714 = vld [vmem:[%s713] sm:$0xf]
    %716 = vrot.lane.b32.xlu0 %v712, 64
    %v717 = vpop.permute.xlu0 %716
    %v720 = vunpack.c.l.s4 1983009808
    %v721 = vunpack.c.0.s8 %v720
    %v722 = vlaneseq
    %v723 = vshrl.u32 %v722, 7
    %v724 = vsub.s32 %v721, %v723
    %v725 = vrot.slane %v714, %v724
    %v726 = vcombine.high %v725, %v725
    %v729 = vsel %vm311, %v717, 0
    %731 = vmatprep.subr.mxu0 %v68
    %732 = vmatpush1.msra.mxu0 %v67
    %733 = vmatprep.subr.mxu0 %v70
    %734 = vmatpush1.msra.mxu0 %v69
    %735 = vmatprep.subr.mxu0 %v72
    %736 = vmatpush1.msra.mxu0 %v71
    %737 = vmatprep.subr.mxu0 %v74
    %738 = vmatpush1.msra.mxu0 %v73
    %739 = vmatprep.subr.mxu0 %v76
    %740 = vmatpush1.msra.mxu0 %v75
    %741 = vmatprep.subr.mxu0 %v78
    %742 = vmatpush1.msra.mxu0 %v77
    %743 = vmatprep.subr.mxu0 %v80
    %744 = vmatpush1.msra.mxu0 %v79
    %745 = vmatprep.subr.mxu0 %v82
    %746 = vmatpush1.msra.mxu0 %v81
    %747 = vmatprep.subr.mxu0 0.0
    %748 = vmatpush1.msra.mxu0 0.0
    %749 = vmatprep.subr.mxu0 0.0
    %750 = vmatpush1.msra.mxu0 0.0
    %751 = vmatprep.subr.mxu0 0.0
    %752 = vmatpush1.msra.mxu0 0.0
    %753 = vmatprep.subr.mxu0 0.0
    %754 = vmatpush1.msra.mxu0 0.0
    %755 = vmatprep.subr.mxu0 0.0
    %756 = vmatpush1.msra.mxu0 0.0
    %757 = vmatprep.subr.mxu0 0.0
    %758 = vmatpush1.msra.mxu0 0.0
    %759 = vmatprep.subr.mxu0 0.0
    %760 = vmatpush1.msra.mxu0 0.0
    %761 = vmatprep.subr.mxu0 0.0
    %762 = vmatpush1.msra.mxu0 0.0
    %763 = vmatprep.subr.mxu0 0.0
    %764 = vmatpush1.msra.mxu0 0.0
    %765 = vmatprep.subr.mxu0 0.0
    %766 = vmatpush1.msra.mxu0 0.0
    %767 = vmatprep.subr.mxu0 0.0
    %768 = vmatpush1.msra.mxu0 0.0
    %769 = vmatprep.subr.mxu0 0.0
    %770 = vmatpush1.msra.mxu0 0.0
    %771 = vmatprep.subr.mxu0 0.0
    %772 = vmatpush1.msra.mxu0 0.0
    %773 = vmatprep.subr.mxu0 0.0
    %774 = vmatpush1.msra.mxu0 0.0
    %775 = vmatprep.subr.mxu0 0.0
    %776 = vmatpush1.msra.mxu0 0.0
    %777 = vmatprep.subr.mxu0 0.0
    %778 = vmatpush1.msra.mxu0 0.0
    %779 = vmatprep.subr.mxu0 0.0
    %780 = vmatpush1.msra.mxu0 0.0
    %781 = vmatprep.subr.mxu0 0.0
    %782 = vmatpush1.msra.mxu0 0.0
    %783 = vmatprep.subr.mxu0 0.0
    %784 = vmatpush1.msra.mxu0 0.0
    %785 = vmatprep.subr.mxu0 0.0
    %786 = vmatpush1.msra.mxu0 0.0
    %787 = vmatprep.subr.mxu0 0.0
    %788 = vmatpush1.msra.mxu0 0.0
    %789 = vmatprep.subr.mxu0 0.0
    %790 = vmatpush1.msra.mxu0 0.0
    %791 = vmatprep.subr.mxu0 0.0
    %792 = vmatpush1.msra.mxu0 0.0
    %793 = vmatprep.subr.mxu0 0.0
    %794 = vmatpush1.msra.mxu0 0.0
    %795 = vmatprep.mubr.f32.mxu0 0.0
    %796 = vmatmul.mubr.f32.gmra.mrb[0].mxu0 %v729
    %v797 = vpop.f32.mrb[0].mxu0
    %v798 = vadd.f32 %v725, %v797
    %v799 = vpop.f32.mrb[0].mxu0
    %v800 = vadd.f32 %v726, %v799
    %801 = vdwg.mxu0
    %v802 = vtanh.pop %v798
    %v803 = vtanh.pop %v800
    %v804 = vmul.f32 %v802, %v47
    %v805 = vmul.f32 %v803, %v48
    %v806 = vadd.f32 %v804, %v49
    %v807 = vadd.f32 %v805, %v50
    %v808 = vmul.f32 %v806, %v710
    %v809 = vmul.f32 %v806, %v807
    %811 = vrot.lane.b32.xlu0 %v809, 64
    %v812 = vpop.permute.xlu0 %811
    %v814 = vadd.f32 %v808, %v812
    %v815 = vtanh.pop %v814
    %v816 = vmul.f32 %v807, %v815
    %s817 = scalar_lea.vmem [#allocation2], 20
    %v818 = vld [vmem:[%s817] sm:$0xf]
    %820 = vrot.lane.b32.xlu0 %v816, 64
    %v821 = vpop.permute.xlu0 %820
    %v824 = vunpack.c.l.s4 1983009808
    %v825 = vunpack.c.0.s8 %v824
    %v826 = vlaneseq
    %v827 = vshrl.u32 %v826, 7
    %v828 = vsub.s32 %v825, %v827
    %v829 = vrot.slane %v818, %v828
    %v830 = vcombine.high %v829, %v829
    %v833 = vsel %vm311, %v821, 0
    %835 = vmatprep.subr.mxu0 %v68
    %836 = vmatpush1.msra.mxu0 %v67
    %837 = vmatprep.subr.mxu0 %v70
    %838 = vmatpush1.msra.mxu0 %v69
    %839 = vmatprep.subr.mxu0 %v72
    %840 = vmatpush1.msra.mxu0 %v71
    %841 = vmatprep.subr.mxu0 %v74
    %842 = vmatpush1.msra.mxu0 %v73
    %843 = vmatprep.subr.mxu0 %v76
    %844 = vmatpush1.msra.mxu0 %v75
    %845 = vmatprep.subr.mxu0 %v78
    %846 = vmatpush1.msra.mxu0 %v77
    %847 = vmatprep.subr.mxu0 %v80
    %848 = vmatpush1.msra.mxu0 %v79
    %849 = vmatprep.subr.mxu0 %v82
    %850 = vmatpush1.msra.mxu0 %v81
    %851 = vmatprep.subr.mxu0 0.0
    %852 = vmatpush1.msra.mxu0 0.0
    %853 = vmatprep.subr.mxu0 0.0
    %854 = vmatpush1.msra.mxu0 0.0
    %855 = vmatprep.subr.mxu0 0.0
    %856 = vmatpush1.msra.mxu0 0.0
    %857 = vmatprep.subr.mxu0 0.0
    %858 = vmatpush1.msra.mxu0 0.0
    %859 = vmatprep.subr.mxu0 0.0
    %860 = vmatpush1.msra.mxu0 0.0
    %861 = vmatprep.subr.mxu0 0.0
    %862 = vmatpush1.msra.mxu0 0.0
    %863 = vmatprep.subr.mxu0 0.0
    %864 = vmatpush1.msra.mxu0 0.0
    %865 = vmatprep.subr.mxu0 0.0
    %866 = vmatpush1.msra.mxu0 0.0
    %867 = vmatprep.subr.mxu0 0.0
    %868 = vmatpush1.msra.mxu0 0.0
    %869 = vmatprep.subr.mxu0 0.0
    %870 = vmatpush1.msra.mxu0 0.0
    %871 = vmatprep.subr.mxu0 0.0
    %872 = vmatpush1.msra.mxu0 0.0
    %873 = vmatprep.subr.mxu0 0.0
    %874 = vmatpush1.msra.mxu0 0.0
    %875 = vmatprep.subr.mxu0 0.0
    %876 = vmatpush1.msra.mxu0 0.0
    %877 = vmatprep.subr.mxu0 0.0
    %878 = vmatpush1.msra.mxu0 0.0
    %879 = vmatprep.subr.mxu0 0.0
    %880 = vmatpush1.msra.mxu0 0.0
    %881 = vmatprep.subr.mxu0 0.0
    %882 = vmatpush1.msra.mxu0 0.0
    %883 = vmatprep.subr.mxu0 0.0
    %884 = vmatpush1.msra.mxu0 0.0
    %885 = vmatprep.subr.mxu0 0.0
    %886 = vmatpush1.msra.mxu0 0.0
    %887 = vmatprep.subr.mxu0 0.0
    %888 = vmatpush1.msra.mxu0 0.0
    %889 = vmatprep.subr.mxu0 0.0
    %890 = vmatpush1.msra.mxu0 0.0
    %891 = vmatprep.subr.mxu0 0.0
    %892 = vmatpush1.msra.mxu0 0.0
    %893 = vmatprep.subr.mxu0 0.0
    %894 = vmatpush1.msra.mxu0 0.0
    %895 = vmatprep.subr.mxu0 0.0
    %896 = vmatpush1.msra.mxu0 0.0
    %897 = vmatprep.subr.mxu0 0.0
    %898 = vmatpush1.msra.mxu0 0.0
    %899 = vmatprep.mubr.f32.mxu0 0.0
    %900 = vmatmul.mubr.f32.gmra.mrb[0].mxu0 %v833
    %v901 = vpop.f32.mrb[0].mxu0
    %v902 = vadd.f32 %v829, %v901
    %v903 = vpop.f32.mrb[0].mxu0
    %v904 = vadd.f32 %v830, %v903
    %905 = vdwg.mxu0
    %v906 = vtanh.pop %v902
    %v907 = vtanh.pop %v904
    %v908 = vmul.f32 %v906, %v47
    %v909 = vmul.f32 %v907, %v48
    %v910 = vadd.f32 %v908, %v49
    %v911 = vadd.f32 %v909, %v50
    %v912 = vmul.f32 %v910, %v814
    %v913 = vmul.f32 %v910, %v911
    %915 = vrot.lane.b32.xlu0 %v913, 64
    %v916 = vpop.permute.xlu0 %915
    %v918 = vadd.f32 %v912, %v916
    %v919 = vtanh.pop %v918
    %v920 = vmul.f32 %v911, %v919
    %s921 = scalar_lea.vmem [#allocation2], 24
    %v922 = vld [vmem:[%s921] sm:$0xf]
    %924 = vrot.lane.b32.xlu0 %v920, 64
    %v925 = vpop.permute.xlu0 %924
    %v928 = vunpack.c.l.s4 1983009808
    %v929 = vunpack.c.0.s8 %v928
    %v930 = vlaneseq
    %v931 = vshrl.u32 %v930, 7
    %v932 = vsub.s32 %v929, %v931
    %v933 = vrot.slane %v922, %v932
    %v934 = vcombine.high %v933, %v933
    %v937 = vsel %vm311, %v925, 0
    %939 = vmatprep.subr.mxu0 %v68
    %940 = vmatpush1.msra.mxu0 %v67
    %941 = vmatprep.subr.mxu0 %v70
    %942 = vmatpush1.msra.mxu0 %v69
    %943 = vmatprep.subr.mxu0 %v72
    %944 = vmatpush1.msra.mxu0 %v71
    %945 = vmatprep.subr.mxu0 %v74
    %946 = vmatpush1.msra.mxu0 %v73
    %947 = vmatprep.subr.mxu0 %v76
    %948 = vmatpush1.msra.mxu0 %v75
    %949 = vmatprep.subr.mxu0 %v78
    %950 = vmatpush1.msra.mxu0 %v77
    %951 = vmatprep.subr.mxu0 %v80
    %952 = vmatpush1.msra.mxu0 %v79
    %953 = vmatprep.subr.mxu0 %v82
    %954 = vmatpush1.msra.mxu0 %v81
    %955 = vmatprep.subr.mxu0 0.0
    %956 = vmatpush1.msra.mxu0 0.0
    %957 = vmatprep.subr.mxu0 0.0
    %958 = vmatpush1.msra.mxu0 0.0
    %959 = vmatprep.subr.mxu0 0.0
    %960 = vmatpush1.msra.mxu0 0.0
    %961 = vmatprep.subr.mxu0 0.0
    %962 = vmatpush1.msra.mxu0 0.0
    %963 = vmatprep.subr.mxu0 0.0
    %964 = vmatpush1.msra.mxu0 0.0
    %965 = vmatprep.subr.mxu0 0.0
    %966 = vmatpush1.msra.mxu0 0.0
    %967 = vmatprep.subr.mxu0 0.0
    %968 = vmatpush1.msra.mxu0 0.0
    %969 = vmatprep.subr.mxu0 0.0
    %970 = vmatpush1.msra.mxu0 0.0
    %971 = vmatprep.subr.mxu0 0.0
    %972 = vmatpush1.msra.mxu0 0.0
    %973 = vmatprep.subr.mxu0 0.0
    %974 = vmatpush1.msra.mxu0 0.0
    %975 = vmatprep.subr.mxu0 0.0
    %976 = vmatpush1.msra.mxu0 0.0
    %977 = vmatprep.subr.mxu0 0.0
    %978 = vmatpush1.msra.mxu0 0.0
    %979 = vmatprep.subr.mxu0 0.0
    %980 = vmatpush1.msra.mxu0 0.0
    %981 = vmatprep.subr.mxu0 0.0
    %982 = vmatpush1.msra.mxu0 0.0
    %983 = vmatprep.subr.mxu0 0.0
    %984 = vmatpush1.msra.mxu0 0.0
    %985 = vmatprep.subr.mxu0 0.0
    %986 = vmatpush1.msra.mxu0 0.0
    %987 = vmatprep.subr.mxu0 0.0
    %988 = vmatpush1.msra.mxu0 0.0
    %989 = vmatprep.subr.mxu0 0.0
    %990 = vmatpush1.msra.mxu0 0.0
    %991 = vmatprep.subr.mxu0 0.0
    %992 = vmatpush1.msra.mxu0 0.0
    %993 = vmatprep.subr.mxu0 0.0
    %994 = vmatpush1.msra.mxu0 0.0
    %995 = vmatprep.subr.mxu0 0.0
    %996 = vmatpush1.msra.mxu0 0.0
    %997 = vmatprep.subr.mxu0 0.0
    %998 = vmatpush1.msra.mxu0 0.0
    %999 = vmatprep.subr.mxu0 0.0
    %1000 = vmatpush1.msra.mxu0 0.0
    %1001 = vmatprep.subr.mxu0 0.0
    %1002 = vmatpush1.msra.mxu0 0.0
    %1003 = vmatprep.mubr.f32.mxu0 0.0
    %1004 = vmatmul.mubr.f32.gmra.mrb[0].mxu0 %v937
    %v1005 = vpop.f32.mrb[0].mxu0
    %v1006 = vadd.f32 %v933, %v1005
    %v1007 = vpop.f32.mrb[0].mxu0
    %v1008 = vadd.f32 %v934, %v1007
    %1009 = vdwg.mxu0
    %v1010 = vtanh.pop %v1006
    %v1011 = vtanh.pop %v1008
    %v1012 = vmul.f32 %v1010, %v47
    %v1013 = vmul.f32 %v1011, %v48
    %v1014 = vadd.f32 %v1012, %v49
    %v1015 = vadd.f32 %v1013, %v50
    %v1016 = vmul.f32 %v1014, %v918
    %v1017 = vmul.f32 %v1014, %v1015
    %1019 = vrot.lane.b32.xlu0 %v1017, 64
    %v1020 = vpop.permute.xlu0 %1019
    %v1022 = vadd.f32 %v1016, %v1020
    %v1023 = vtanh.pop %v1022
    %v1024 = vmul.f32 %v1015, %v1023
    %s1025 = scalar_lea.vmem [#allocation2], 28
    %v1026 = vld [vmem:[%s1025] sm:$0xf]
    %1028 = vrot.lane.b32.xlu0 %v1024, 64
    %v1029 = vpop.permute.xlu0 %1028
    %v1032 = vunpack.c.l.s4 1983009808
    %v1033 = vunpack.c.0.s8 %v1032
    %v1034 = vlaneseq
    %v1035 = vshrl.u32 %v1034, 7
    %v1036 = vsub.s32 %v1033, %v1035
    %v1037 = vrot.slane %v1026, %v1036
    %v1038 = vcombine.high %v1037, %v1037
    %v1041 = vsel %vm311, %v1029, 0
    %1043 = vmatprep.subr.mxu0 %v68
    %1044 = vmatpush1.msra.mxu0 %v67
    %1045 = vmatprep.subr.mxu0 %v70
    %1046 = vmatpush1.msra.mxu0 %v69
    %1047 = vmatprep.subr.mxu0 %v72
    %1048 = vmatpush1.msra.mxu0 %v71
    %1049 = vmatprep.subr.mxu0 %v74
    %1050 = vmatpush1.msra.mxu0 %v73
    %1051 = vmatprep.subr.mxu0 %v76
    %1052 = vmatpush1.msra.mxu0 %v75
    %1053 = vmatprep.subr.mxu0 %v78
    %1054 = vmatpush1.msra.mxu0 %v77
    %1055 = vmatprep.subr.mxu0 %v80
    %1056 = vmatpush1.msra.mxu0 %v79
    %1057 = vmatprep.subr.mxu0 %v82
    %1058 = vmatpush1.msra.mxu0 %v81
    %1059 = vmatprep.subr.mxu0 0.0
    %1060 = vmatpush1.msra.mxu0 0.0
    %1061 = vmatprep.subr.mxu0 0.0
    %1062 = vmatpush1.msra.mxu0 0.0
    %1063 = vmatprep.subr.mxu0 0.0
    %1064 = vmatpush1.msra.mxu0 0.0
    %1065 = vmatprep.subr.mxu0 0.0
    %1066 = vmatpush1.msra.mxu0 0.0
    %1067 = vmatprep.subr.mxu0 0.0
    %1068 = vmatpush1.msra.mxu0 0.0
    %1069 = vmatprep.subr.mxu0 0.0
    %1070 = vmatpush1.msra.mxu0 0.0
    %1071 = vmatprep.subr.mxu0 0.0
    %1072 = vmatpush1.msra.mxu0 0.0
    %1073 = vmatprep.subr.mxu0 0.0
    %1074 = vmatpush1.msra.mxu0 0.0
    %1075 = vmatprep.subr.mxu0 0.0
    %1076 = vmatpush1.msra.mxu0 0.0
    %1077 = vmatprep.subr.mxu0 0.0
    %1078 = vmatpush1.msra.mxu0 0.0
    %1079 = vmatprep.subr.mxu0 0.0
    %1080 = vmatpush1.msra.mxu0 0.0
    %1081 = vmatprep.subr.mxu0 0.0
    %1082 = vmatpush1.msra.mxu0 0.0
    %1083 = vmatprep.subr.mxu0 0.0
    %1084 = vmatpush1.msra.mxu0 0.0
    %1085 = vmatprep.subr.mxu0 0.0
    %1086 = vmatpush1.msra.mxu0 0.0
    %1087 = vmatprep.subr.mxu0 0.0
    %1088 = vmatpush1.msra.mxu0 0.0
    %1089 = vmatprep.subr.mxu0 0.0
    %1090 = vmatpush1.msra.mxu0 0.0
    %1091 = vmatprep.subr.mxu0 0.0
    %1092 = vmatpush1.msra.mxu0 0.0
    %1093 = vmatprep.subr.mxu0 0.0
    %1094 = vmatpush1.msra.mxu0 0.0
    %1095 = vmatprep.subr.mxu0 0.0
    %1096 = vmatpush1.msra.mxu0 0.0
    %1097 = vmatprep.subr.mxu0 0.0
    %1098 = vmatpush1.msra.mxu0 0.0
    %1099 = vmatprep.subr.mxu0 0.0
    %1100 = vmatpush1.msra.mxu0 0.0
    %1101 = vmatprep.subr.mxu0 0.0
    %1102 = vmatpush1.msra.mxu0 0.0
    %1103 = vmatprep.subr.mxu0 0.0
    %1104 = vmatpush1.msra.mxu0 0.0
    %1105 = vmatprep.subr.mxu0 0.0
    %1106 = vmatpush1.msra.mxu0 0.0
    %1107 = vmatprep.mubr.f32.mxu0 0.0
    %1108 = vmatmul.mubr.f32.gmra.mrb[0].mxu0 %v1041
    %v1109 = vpop.f32.mrb[0].mxu0
    %v1110 = vadd.f32 %v1037, %v1109
    %v1111 = vpop.f32.mrb[0].mxu0
    %v1112 = vadd.f32 %v1038, %v1111
    %1113 = vdwg.mxu0
    %v1114 = vtanh.pop %v1110
    %v1115 = vtanh.pop %v1112
    %v1116 = vmul.f32 %v1114, %v47
    %v1117 = vmul.f32 %v1115, %v48
    %v1118 = vadd.f32 %v1116, %v49
    %v1119 = vadd.f32 %v1117, %v50
    %v1120 = vmul.f32 %v1118, %v1022
    %v1121 = vmul.f32 %v1118, %v1119
    %1123 = vrot.lane.b32.xlu0 %v1121, 64
    %v1124 = vpop.permute.xlu0 %1123
    %v1126 = vadd.f32 %v1120, %v1124
    %v1127 = vtanh.pop %v1126
    %v1128 = vmul.f32 %v1119, %v1127
    %v1129 = vld [vmem:[%s4] sm:$0xff]
    %v1130 = vld [vmem:[%s4 + $0x8] sm:$0xff]
    %v1131 = vld [vmem:[%s4 + $0x10] sm:$0xff]
    %v1132 = vld [vmem:[%s4 + $0x18] sm:$0xff]
    %v1133 = vld [vmem:[%s4 + $0x20] sm:$0xff]
    %v1134 = vld [vmem:[%s4 + $0x28] sm:$0xff]
    %v1135 = vld [vmem:[%s4 + $0x30] sm:$0xff]
    %v1136 = vld [vmem:[%s4 + $0x38] sm:$0xff]
    %v1137 = vld [vmem:[%s5] sm:$0x1]
    %v1139 = vlaneseq
    %v1140 = vshrl.u32 %v1139, 7
    %v1141 = vsub.s32 0, %v1140
    %v1142 = vrot.slane %v1137, %v1141
    %1145 = vrot.lane.b32.xlu0 %v1128, 64
    %v1146 = vpop.permute.xlu0 %1145
    %v1147 = vsel %vm311, %v1146, 0
    %1149 = vmatprep.subr.mxu0 0.0
    %1150 = vmatpush1.msra.mxu0 %v1129
    %1151 = vmatprep.subr.mxu0 0.0
    %1152 = vmatpush1.msra.mxu0 %v1130
    %1153 = vmatprep.subr.mxu0 0.0
    %1154 = vmatpush1.msra.mxu0 %v1131
    %1155 = vmatprep.subr.mxu0 0.0
    %1156 = vmatpush1.msra.mxu0 %v1132
    %1157 = vmatprep.subr.mxu0 0.0
    %1158 = vmatpush1.msra.mxu0 %v1133
    %1159 = vmatprep.subr.mxu0 0.0
    %1160 = vmatpush1.msra.mxu0 %v1134
    %1161 = vmatprep.subr.mxu0 0.0
    %1162 = vmatpush1.msra.mxu0 %v1135
    %1163 = vmatprep.subr.mxu0 0.0
    %1164 = vmatpush1.msra.mxu0 %v1136
    %1165 = vmatprep.subr.mxu0 0.0
    %1166 = vmatpush1.msra.mxu0 0.0
    %1167 = vmatprep.subr.mxu0 0.0
    %1168 = vmatpush1.msra.mxu0 0.0
    %1169 = vmatprep.subr.mxu0 0.0
    %1170 = vmatpush1.msra.mxu0 0.0
    %1171 = vmatprep.subr.mxu0 0.0
    %1172 = vmatpush1.msra.mxu0 0.0
    %1173 = vmatprep.subr.mxu0 0.0
    %1174 = vmatpush1.msra.mxu0 0.0
    %1175 = vmatprep.subr.mxu0 0.0
    %1176 = vmatpush1.msra.mxu0 0.0
    %1177 = vmatprep.subr.mxu0 0.0
    %1178 = vmatpush1.msra.mxu0 0.0
    %1179 = vmatprep.subr.mxu0 0.0
    %1180 = vmatpush1.msra.mxu0 0.0
    %1181 = vmatprep.subr.mxu0 0.0
    %1182 = vmatpush1.msra.mxu0 0.0
    %1183 = vmatprep.subr.mxu0 0.0
    %1184 = vmatpush1.msra.mxu0 0.0
    %1185 = vmatprep.subr.mxu0 0.0
    %1186 = vmatpush1.msra.mxu0 0.0
    %1187 = vmatprep.subr.mxu0 0.0
    %1188 = vmatpush1.msra.mxu0 0.0
    %1189 = vmatprep.subr.mxu0 0.0
    %1190 = vmatpush1.msra.mxu0 0.0
    %1191 = vmatprep.subr.mxu0 0.0
    %1192 = vmatpush1.msra.mxu0 0.0
    %1193 = vmatprep.subr.mxu0 0.0
    %1194 = vmatpush1.msra.mxu0 0.0
    %1195 = vmatprep.subr.mxu0 0.0
    %1196 = vmatpush1.msra.mxu0 0.0
    %1197 = vmatprep.subr.mxu0 0.0
    %1198 = vmatpush1.msra.mxu0 0.0
    %1199 = vmatprep.subr.mxu0 0.0
    %1200 = vmatpush1.msra.mxu0 0.0
    %1201 = vmatprep.subr.mxu0 0.0
    %1202 = vmatpush1.msra.mxu0 0.0
    %1203 = vmatprep.subr.mxu0 0.0
    %1204 = vmatpush1.msra.mxu0 0.0
    %1205 = vmatprep.subr.mxu0 0.0
    %1206 = vmatpush1.msra.mxu0 0.0
    %1207 = vmatprep.subr.mxu0 0.0
    %1208 = vmatpush1.msra.mxu0 0.0
    %1209 = vmatprep.subr.mxu0 0.0
    %1210 = vmatpush1.msra.mxu0 0.0
    %1211 = vmatprep.subr.mxu0 0.0
    %1212 = vmatpush1.msra.mxu0 0.0
    %1213 = vmatprep.mubr.f32.mxu0 0.0
    %1214 = vmatmul.mubr.f32.gmra.mrb[0].mxu0 %v1147
    %v1215 = vpop.f32.mrb[0].mxu0
    %v1216 = vadd.f32 %v1142, %v1215
    %v1217 = vpop.f32.mrb[0].mxu0
    %1218 = vdwg.mxu0
    %vm1219 = vcmask 9216
    %1220 = vst.msk [vmem:[#allocation6] sm:$0x3] %vm1219, %v1216
    // Predicated region
    $region30: #{tpu_custom_call.1} parent=1 // pred_check
      _
    $region31: #{tpu_custom_call.1} parent=1 // pred_check_branch
      %1222 = sbr.rel (0) target = $region33
    $region32: #{tpu_custom_call.1} parent=1 // pred_region
      %s1224 = ssub.s32 32, 32
      %1225 = vsyncadd [#allocation5], %s1224
      %s1227 = sshll.u32 [#allocation6], 4
      %s1228 = int_to_ptr.vmem [resolvable:$true] %s1227
      %1230 = dma.vmem_to_hbm [thread:$0]  %s1228, 32, %s6, [#allocation5]
    $region33: #{tpu_custom_call.1} parent=1 // pred_fallthru
      _
    // Predicated region
    $region34: #{tpu_custom_call.1} parent=1 // pred_check
      _
    $region35: #{tpu_custom_call.1} parent=1 // pred_check_branch
      %1232 = sbr.rel (0) target = $region37
    $region36: #{tpu_custom_call.1} parent=1 // pred_region
      %1233 = dma.done [#allocation5], 32
    $region37: #{tpu_custom_call.1} parent=1 // pred_fallthru
      _
    %1234 = vsyncpa [#allocation4], 1
    %1235 = vsyncpa [#allocation5], 1

</llo_original>
